<compile_context>
chip_gen: v7x
topology: tpu7x:2x2x1
jax: 0.10.0
libtpu: 0.0.40
codegen_flags: <defaults>
</compile_context>

<pallas_src>
import functools

import jax
import jax.numpy as jnp
from jax.experimental import pallas as pl
from jax.experimental.pallas import tpu as pltpu

_LANE = 128
_SUBLANE = 8
_MAX_TILE_ROWS = 8192      # 4 MiB f32 / 2 MiB bf16 per streaming buffer
_EPS = 1e-9


def _round_down(x, m):
    return (x // m) * m


def _tensorcores_per_device():
    """TensorCores one Pallas grid can span via 'parallel' axes (megacore)."""
    try:
        dev = jax.devices()[0]
        if dev.platform != "tpu":
            return 1
        kind = dev.device_kind.lower()
    except Exception:
        return 1
    # Megacore chips (2 TensorCores behind one JAX device): v4, v5p, v7x.
    # v5e ("v5 lite") and v6e expose a single TensorCore and fall through.
    for tag in ("v4", "v5p", "7x", "v7"):
        if tag in kind:
            return 2
    return 1


def _sum_log_sigmoid_kernel(x_ref, out_ref, *, negate, rows_valid, tile_rows,
                            acc_rows, steps_per_split, needs_mask):
    """Accumulates sum(log(sigmoid(+/-x) + 1e-9)) into a resident block."""
    c = pl.program_id(0)            # TensorCore split  ("parallel")
    i = pl.program_id(1)            # streaming / reduction axis ("arbitrary")

    @pl.when(i == 0)
    def _init():
        out_ref[...] = jnp.zeros_like(out_ref)

    x = x_ref[...].astype(jnp.float32)
    if negate:
        x = -x                      # 1 - sigmoid(x) == sigmoid(-x)
    # sigmoid via tanh: exactly one EUP push (tanh) + VPU mul/add, then one
    # more EUP push for the log; the eps saturation semantics are preserved.
    sig = 0.5 * jnp.tanh(0.5 * x) + 0.5
    logv = jnp.log(sig + _EPS)

    groups = tile_rows // acc_rows

    def _accumulate(vals):
        # (tile_rows, 128) -> (groups, acc_rows, 128): reduce along the major
        # axis (VPU-only, no cross-lane traffic) into acc_rows//8 independent
        # vreg chains, then fold into the resident accumulator block.
        r = vals.reshape(groups, acc_rows, _LANE)
        part = jnp.sum(r, axis=0) if groups > 1 else r[0]
        out_ref[0] += part

    if needs_mask:
        # Only blocks overlapping the ragged row tail (or a clamped overshoot
        # block of an uneven core split) pay for the mask.
        block_row0 = (c * steps_per_split + i) * tile_rows
        is_full = block_row0 + tile_rows <= rows_valid

        @pl.when(is_full)
        def _fast():
            _accumulate(logv)

        @pl.when(jnp.logical_not(is_full))
        def _tail():
            rid = jax.lax.broadcasted_iota(jnp.int32, (tile_rows, _LANE), 0)
            valid = rid < (rows_valid - block_row0)
            _accumulate(jnp.where(valid, logv, 0.0))
    else:
        _accumulate(logv)


def _sum_log_sigmoid(x, *, negate):
    """sum over all elements of log(sigmoid(+/-x) + 1e-9), streamed from HBM."""
    n = int(x.size)
    flat = jnp.reshape(x, (-1,))

    # Minimal padding: only to a 128-lane multiple (needed for the free 2-D
    # reshape); its exact contribution is removed analytically below.
    # TODO(synk): a manual-DMA ragged tail (memory_space=pl.ANY) would avoid
    # this whole-tensor copy for 128-unaligned sizes.
    pad = (-n) % _LANE
    if pad:
        flat = jnp.pad(flat, (0, pad))
    rows = (n + pad) // _LANE
    x2d = flat.reshape(rows, _LANE)

    # Tile sizing: biggest multiple-of-8 row tile that fits the budget and
    # never exceeds the array (partial *last* blocks are fine).
    if rows <= _SUBLANE:
        tile_rows = rows
    else:
        tile_rows = min(_MAX_TILE_ROWS, _round_down(rows, _SUBLANE))
    total_blocks = pl.cdiv(rows, tile_rows)

    # Generation-aware core split.
    n_cores = _tensorcores_per_device()
    if n_cores > 1 and total_blocks == 1 and rows >= 2 * _SUBLANE:
        # Single-tile input on a megacore chip: halve the tile so both
        # TensorCores stream half of the rows.
        tile_rows = max(_SUBLANE, _round_down(rows // 2, _SUBLANE))
        total_blocks = pl.cdiv(rows, tile_rows)
    n_split = n_cores if total_blocks >= n_cores else 1
    steps_per_split = pl.cdiv(total_blocks, n_split)

    # Accumulator granularity: 32 rows (4 vregs => 4 independent VALU chains)
    # whenever the tile allows it.
    if tile_rows % 32 == 0:
        acc_rows = 32
    elif tile_rows % 16 == 0:
        acc_rows = 16
    elif tile_rows % _SUBLANE == 0:
        acc_rows = _SUBLANE
    else:
        acc_rows = tile_rows

    last_block = total_blocks - 1
    if n_split * steps_per_split == total_blocks:
        row_index_map = lambda c, i: (c * steps_per_split + i, 0)
    else:
        # Uneven split: clamp overshoot steps onto the last block; their
        # contribution is masked to zero inside the kernel.
        row_index_map = lambda c, i: (
            jnp.minimum(c * steps_per_split + i, last_block), 0)

    needs_mask = (n_split * steps_per_split * tile_rows) != rows

    kernel = functools.partial(
        _sum_log_sigmoid_kernel, negate=negate, rows_valid=rows,
        tile_rows=tile_rows, acc_rows=acc_rows,
        steps_per_split=steps_per_split, needs_mask=needs_mask)

    partials = pl.pallas_call(
        kernel,
        out_shape=jax.ShapeDtypeStruct((n_split, acc_rows, _LANE),
                                       jnp.float32),
        grid_spec=pltpu.PrefetchScalarGridSpec(
            num_scalar_prefetch=0,
            grid=(n_split, steps_per_split),
            in_specs=[pl.BlockSpec((tile_rows, _LANE), row_index_map)],
            out_specs=pl.BlockSpec((1, acc_rows, _LANE),
                                   lambda c, i: (c, 0, 0)),
        ),
        compiler_params=pltpu.CompilerParams(
            dimension_semantics=("parallel", "arbitrary")),
    )(x2d)

    total = jnp.sum(partials)               # tiny final cross-lane reduce
    if pad:
        # Explicit zero padding contributes exactly log(sigmoid(0) + eps) per
        # padded element (for either sign); remove it analytically.
        total = total - pad * jnp.log(jnp.float32(0.5) + jnp.float32(_EPS))
    return total


def d_loss(p_y, p_t):
    """Pallas implementation of DLoss.forward(p_y, p_t) -> scalar f32."""
    sum_log_sig_t = _sum_log_sigmoid(p_t, negate=False)       # log(sigmoid(p_t)+eps)
    sum_log_one_minus_y = _sum_log_sigmoid(p_y, negate=True)  # log(1-sigmoid(p_y)+eps)
    return (-(sum_log_sig_t / jnp.float32(p_t.size))
            - (sum_log_one_minus_y / jnp.float32(p_y.size)))


def d_loss_ref(p_y, p_t):
    """Pure-JAX reference matching the PyTorch module."""
    sig_t = jax.nn.sigmoid(p_t.astype(jnp.float32))
    sig_y = jax.nn.sigmoid(p_y.astype(jnp.float32))
    return (-jnp.mean(jnp.log(sig_t + _EPS))
            - jnp.mean(jnp.log(1.0 - sig_y + _EPS)))


if __name__ == "__main__":
    key = jax.random.PRNGKey(0)
    k1, k2, k3, k4, k5, k6, k7, k8 = jax.random.split(key, 8)

    # Primary check: small NCHW discriminator logits (single full tile).
    p_y = jax.random.normal(k1, (2, 4, 16, 16), dtype=jnp.float32)
    p_t = jax.random.normal(k2, (2, 4, 16, 16), dtype=jnp.float32)
    loss = jax.block_until_ready(d_loss(p_y, p_t))
    ref = jax.block_until_ready(d_loss_ref(p_y, p_t))
    assert jnp.allclose(loss, ref, rtol=1e-5, atol=1e-5), (loss, ref)

    # Unequal sizes -> exercises the partial last block + pl.when mask path.
    p_y2 = jax.random.normal(k3, (2, 4, 16, 16), dtype=jnp.float32)
    p_t2 = jax.random.normal(k4, (2, 4, 16, 12), dtype=jnp.float32)
    loss2 = jax.block_until_ready(d_loss(p_y2, p_t2))
    ref2 = jax.block_until_ready(d_loss_ref(p_y2, p_t2))
    assert jnp.allclose(loss2, ref2, rtol=1e-5, atol=1e-5), (loss2, ref2)

    # Native bf16 logits stream without any wrapper-side cast.
    p_y3 = jax.random.normal(k5, (2, 4, 16, 16), dtype=jnp.bfloat16)
    p_t3 = jax.random.normal(k6, (2, 4, 16, 16), dtype=jnp.bfloat16)
    loss3 = jax.block_until_ready(d_loss(p_y3, p_t3))
    ref3 = jax.block_until_ready(d_loss_ref(p_y3, p_t3))
    assert jnp.allclose(loss3, ref3, rtol=1e-5, atol=1e-5), (loss3, ref3)

    # Larger input -> multi-step accumulation (and 2-core split on megacore).
    p_y4 = jax.random.normal(k7, (8, 8, 128, 128), dtype=jnp.float32)
    p_t4 = jax.random.normal(k8, (8, 8, 128, 128), dtype=jnp.float32)
    loss4 = jax.block_until_ready(d_loss(p_y4, p_t4))
    ref4 = jax.block_until_ready(d_loss_ref(p_y4, p_t4))
    assert jnp.allclose(loss4, ref4, rtol=1e-5, atol=1e-4), (loss4, ref4)

    print("KERNEL_OK")
</pallas_src>

<mosaic_0001>
module attributes {stable_mosaic.version = 11 : i64} {
  func.func @_sum_log_sigmoid_kernel(%arg0: i32, %arg1: i32, %arg2: memref<16x128xf32, #tpu.memory_space<vmem>>, %arg3: memref<1x16x128xf32, #tpu.memory_space<vmem>>) attributes {dimension_semantics = [#tpu.dimension_semantics<parallel>, #tpu.dimension_semantics<arbitrary>], iteration_bounds = array<i64: 1, 1>, scalar_prefetch = 0 : i64, scratch_operands = 0 : i64, tpu.core_type = #tpu.core_type<tc>, window_params = [{transform_indices = @transform_0, window_bounds = array<i64: 16, 128>}, {transform_indices = @transform_1, window_bounds = array<i64: 1, 16, 128>}]} {
    %c0_i32 = arith.constant 0 : i32
    %0 = arith.cmpi eq, %arg1, %c0_i32 : i32
    %1 = arith.extui %0 : i1 to i32
    %c0_i32_0 = arith.constant 0 : i32
    %2 = arith.cmpi ne, %1, %c0_i32_0 : i32
    scf.if %2 {
      %cst_11 = arith.constant 0.000000e+00 : f32
      %22 = vector.broadcast %cst_11 : f32 to vector<1x16x128xf32>
      %c0_12 = arith.constant 0 : index
      %c0_13 = arith.constant 0 : index
      %c0_14 = arith.constant 0 : index
      %23 = vector.load %arg3[%c0_12, %c0_13, %c0_14] : memref<1x16x128xf32, #tpu.memory_space<vmem>>, vector<1x16x128xf32>
      tpu.vector_store %arg3[%c0_12, %c0_13, %c0_14], %22 {strides = array<i32>} : memref<1x16x128xf32, #tpu.memory_space<vmem>>, vector<1x16x128xf32>,
    } else {
    }
    %c0 = arith.constant 0 : index
    %c0_1 = arith.constant 0 : index
    %3 = vector.load %arg2[%c0, %c0_1] : memref<16x128xf32, #tpu.memory_space<vmem>>, vector<16x128xf32>
    %cst = arith.constant 5.000000e-01 : f32
    %4 = vector.broadcast %cst : f32 to vector<16x128xf32>
    %5 = arith.mulf %4, %3 : vector<16x128xf32>
    %6 = math.tanh %5 : vector<16x128xf32>
    %cst_2 = arith.constant 5.000000e-01 : f32
    %7 = vector.broadcast %cst_2 : f32 to vector<16x128xf32>
    %8 = arith.mulf %7, %6 : vector<16x128xf32>
    %cst_3 = arith.constant 5.000000e-01 : f32
    %9 = vector.broadcast %cst_3 : f32 to vector<16x128xf32>
    %10 = arith.addf %8, %9 : vector<16x128xf32>
    %cst_4 = arith.constant 9.99999971E-10 : f32
    %11 = vector.broadcast %cst_4 : f32 to vector<16x128xf32>
    %12 = arith.addf %10, %11 : vector<16x128xf32>
    %13 = math.log %12 : vector<16x128xf32>
    %14 = vector.shape_cast %13 : vector<16x128xf32> to vector<1x16x128xf32>
    %15 = vector.shape_cast %14 : vector<1x16x128xf32> to vector<16x128xf32>
    %c0_5 = arith.constant 0 : index
    %c0_6 = arith.constant 0 : index
    %c0_7 = arith.constant 0 : index
    %16 = vector.load %arg3[%c0_5, %c0_6, %c0_7] : memref<1x16x128xf32, #tpu.memory_space<vmem>>, vector<1x16x128xf32>
    %17 = vector.shape_cast %16 : vector<1x16x128xf32> to vector<16x128xf32>
    %18 = arith.addf %17, %15 : vector<16x128xf32>
    %c0_8 = arith.constant 0 : index
    %c0_9 = arith.constant 0 : index
    %c0_10 = arith.constant 0 : index
    %19 = vector.load %arg3[%c0_8, %c0_9, %c0_10] : memref<1x16x128xf32, #tpu.memory_space<vmem>>, vector<1x16x128xf32>
    %20 = vector.shape_cast %19 : vector<1x16x128xf32> to vector<16x128xf32>
    %21 = vector.shape_cast %18 : vector<16x128xf32> to vector<1x16x128xf32>
    tpu.vector_store %arg3[%c0_8, %c0_9, %c0_10], %21 {strides = array<i32>} : memref<1x16x128xf32, #tpu.memory_space<vmem>>, vector<1x16x128xf32>,
    return
  }
  func.func @transform_0(%arg0: i32, %arg1: i32) -> (i32, i32) {
    %c1_i32 = arith.constant 1 : i32
    %0 = arith.muli %arg0, %c1_i32 : i32
    %1 = arith.addi %0, %arg1 : i32
    %c0_i32 = arith.constant 0 : i32
    %c0_i32_0 = arith.constant 0 : i32
    return %1, %c0_i32 : i32, i32
  }
  func.func @transform_1(%arg0: i32, %arg1: i32) -> (i32, i32, i32) {
    %c0_i32 = arith.constant 0 : i32
    %c0_i32_0 = arith.constant 0 : i32
    %c0_i32_1 = arith.constant 0 : i32
    return %arg0, %c0_i32, %c0_i32_0 : i32, i32, i32
  }
}

</mosaic_0001>

<llo_original>
// kernel: tpu_custom_call.1
$region0: #{tpu_custom_call.1}
  #allocation0 [shape = 'u32[]', space=smem, size = 0x4, offset = 0x4, fixed_abs, tag = 'smem constant byte address 0x4 - core index']
  #allocation1 [shape = 'u32[144,128]{1,0:T(1,128)}', space=vmem, size = 0x12000, scoped, tag = 'internal scratch']
  %s0 = inlined_call_operand.hbm [shape: f32[16,128], index: 0, kind: input, shape index: {}]
  %s1 = inlined_call_operand.hbm [shape: f32[1,16,128], index: 1, kind: output, shape index: {}]
  %s2 = sld [smem:[#allocation0]]
  $region22: #{tpu_custom_call.1} parent=0
    _
  %s4 = ssub.s32 1, %s2
  %s5 = scalar_select 0, %s4, %s2
  $region1: #{tpu_custom_call.1} parent=0
    #allocation2 [shape = 'u8[8192]{0}', space=vmem, size = 0x2000, scoped, tag = 'input window, operand 0, single buffered']
    #allocation3 [shape = 's32[1]{0}', space=sflag, size = 0x4, scoped, tag = 'scoped memory for tpu_custom_call.1']
    #allocation4 [shape = 's32[1]{0}', space=sflag, size = 0x4, scoped, tag = 'scoped memory for tpu_custom_call.1']
    #allocation5 [shape = 'u8[8192]{0}', space=vmem, size = 0x2000, scoped, tag = 'output window, operand 0, single buffered']
    %6 = vsyncpa [#allocation3], 0
    %7 = vsyncpa [#allocation4], 0
    // Predicated region
    $region2: #{tpu_custom_call.1} parent=1 // pred_check
      _
    $region3: #{tpu_custom_call.1} parent=1 // pred_check_branch
      %9 = sbr.rel (0) target = $region5
    $region4: #{tpu_custom_call.1} parent=1 // pred_region
      %s10 = sadd.s32 0, 0
      %s11 = smul.u32 2, %s10
      %s13 = ssub.s32 256, 256
      %14 = vsyncadd [#allocation3], %s13
      %s15 = smul.addr %s11, 128
      %s16 = scalar_lea.hbm %s0, %s15
      %s17 = sshll.u32 [#allocation2], 4
      %s18 = int_to_ptr.vmem [resolvable:$true] %s17
      %23 = dma.hbm_to_vmem [thread:$0]  %s16, 256, %s18, [#allocation3], 128, 128, 8
    $region5: #{tpu_custom_call.1} parent=1 // pred_fallthru
      _
    // Predicated region
    $region6: #{tpu_custom_call.1} parent=1 // pred_check
      _
    $region7: #{tpu_custom_call.1} parent=1 // pred_check_branch
      %25 = sbr.rel (0) target = $region9
    $region8: #{tpu_custom_call.1} parent=1 // pred_region
      %26 = dma.done [#allocation3], 256
    $region9: #{tpu_custom_call.1} parent=1 // pred_fallthru
      _
    %s27 = sadd.s32 0, 0
    %s28 = smul.u32 2, %s27
    %p29 = scmp.eq.s32.totalorder 0, 0
    // Predicated region
    $region10: #{tpu_custom_call.1} parent=1 // pred_check
      %p30 = pneg %p29
    $region11: #{tpu_custom_call.1} parent=1 // pred_check_branch
      %32 = sbr.rel (%p30) target = $region13
    $region12: #{tpu_custom_call.1} parent=1 // pred_region
      %33 = vst [vmem:[#allocation5] sm:$0xff] 0.0
      %34 = vst [vmem:[#allocation5 + $0x8] sm:$0xff] 0.0
    $region13: #{tpu_custom_call.1} parent=1 // pred_fallthru
      _
    %v35 = vld [vmem:[#allocation2] sm:$0xff]
    %v36 = vld [vmem:[#allocation2 + $0x8] sm:$0xff]
    %v37 = vmul.f32 %v35, 0.5
    %v38 = vmul.f32 %v36, 0.5
    %v39 = vtanh.pop %v37
    %v40 = vtanh.pop %v38
    %v41 = vmul.f32 %v39, 0.5
    %v42 = vmul.f32 %v40, 0.5
    %v43 = vadd.f32 %v41, 0.5
    %v44 = vadd.f32 %v42, 0.5
    %v45 = vadd.f32 %v43, 1e-09
    %v46 = vadd.f32 %v44, 1e-09
    %v47 = vlog2.pop %v45
    %v48 = vmul.f32 %v47, 0.6931472
    %v49 = vlog2.pop %v46
    %v50 = vmul.f32 %v49, 0.6931472
    %v51 = vld [vmem:[#allocation5] sm:$0xff]
    %v52 = vld [vmem:[#allocation5 + $0x8] sm:$0xff]
    %v53 = vadd.f32 %v51, %v48
    %v54 = vadd.f32 %v52, %v50
    %55 = vst [vmem:[#allocation5] sm:$0xff] %v53
    %56 = vst [vmem:[#allocation5 + $0x8] sm:$0xff] %v54
    // Predicated region
    $region14: #{tpu_custom_call.1} parent=1 // pred_check
      _
    $region15: #{tpu_custom_call.1} parent=1 // pred_check_branch
      %58 = sbr.rel (0) target = $region17
    $region16: #{tpu_custom_call.1} parent=1 // pred_region
      %s60 = ssub.s32 256, 256
      %61 = vsyncadd [#allocation4], %s60
      %s62 = sshll.u32 [#allocation5], 4
      %s63 = int_to_ptr.vmem [resolvable:$true] %s62
      %68 = dma.vmem_to_hbm [thread:$0]  %s63, 256, %s1, [#allocation4], 128, 128, 8
    $region17: #{tpu_custom_call.1} parent=1 // pred_fallthru
      _
    // Predicated region
    $region18: #{tpu_custom_call.1} parent=1 // pred_check
      _
    $region19: #{tpu_custom_call.1} parent=1 // pred_check_branch
      %70 = sbr.rel (0) target = $region21
    $region20: #{tpu_custom_call.1} parent=1 // pred_region
      %71 = dma.done [#allocation4], 256
    $region21: #{tpu_custom_call.1} parent=1 // pred_fallthru
      _
    %72 = vsyncpa [#allocation3], 1
    %73 = vsyncpa [#allocation4], 1

</llo_original>
